<compile_context>
chip_gen: v7x
topology: tpu7x:2x2x1
jax: 0.10.0
libtpu: 0.0.40
codegen_flags: <defaults>
</compile_context>

<pallas_src>
import functools

import jax
import jax.numpy as jnp
from jax import lax
from jax.experimental import pallas as pl
from jax.experimental.pallas import tpu as pltpu


# ----------------------------------------------------------------------------
# Single-pass kernel: one (b_tile, C, HW) block per grid step.
# ----------------------------------------------------------------------------
def _cbam_channel_kernel(x_ref, w1_ref, w2_ref, o_ref, *, hw):
    # x_ref: (B_TILE, C, HW)   w1_ref: (Cr, C)   w2_ref: (C, Cr)
    x = x_ref[...]                                            # native dtype

    # f32-accumulated pooling; no full-block f32 copy is kept live.
    avg = jnp.sum(x, axis=-1, dtype=jnp.float32) * (1.0 / hw)  # (B, C)
    mx = jnp.max(x, axis=-1).astype(jnp.float32)               # (B, C)

    w1 = w1_ref[...].astype(jnp.float32)
    w2 = w2_ref[...].astype(jnp.float32)

    # Shared MLP: fc(v) = W2 @ relu(W1 @ v).  The second layer is linear, so
    # fc(avg) + fc(mx) == W2 @ (relu(W1 avg) + relu(W1 mx)): 3 matmuls, not 4.
    dn = (((1,), (1,)), ((), ()))                              # contract rhs dim 1
    h = (jnp.maximum(lax.dot_general(avg, w1, dn,
                                     preferred_element_type=jnp.float32), 0.0)
         + jnp.maximum(lax.dot_general(mx, w1, dn,
                                       preferred_element_type=jnp.float32), 0.0))
    logits = lax.dot_general(h, w2, dn,
                             preferred_element_type=jnp.float32)  # (B, C)
    attn = jax.nn.sigmoid(logits).astype(o_ref.dtype)             # (B, C)

    # Gate in the input dtype (bf16 stays bf16 on the VPU).
    o_ref[...] = x * attn[:, :, None]


# ----------------------------------------------------------------------------
# Two-pass fallback: HW-tiled pooling pass (-> attn), then a streamed gate.
# Used when a single (C, HW) slab does not fit the VMEM budget.
# ----------------------------------------------------------------------------
def _cbam_pool_kernel(x_ref, w1_ref, w2_ref, attn_ref, sum_sc, max_sc,
                      *, hw_true, hw_tile):
    j = pl.program_id(1)

    @pl.when(j == 0)
    def _():
        sum_sc[...] = jnp.zeros_like(sum_sc)
        max_sc[...] = jnp.full_like(max_sc, -jnp.inf)

    x = x_ref[...]                                             # (1, C, hw_tile)
    lane = lax.broadcasted_iota(jnp.int32, (1, 1, hw_tile), 2)
    valid = (j * hw_tile + lane) < hw_true                     # mask partial chunk

    sum_sc[...] += jnp.sum(jnp.where(valid, x, 0.0),
                           axis=-1, dtype=jnp.float32)
    max_sc[...] = jnp.maximum(
        max_sc[...],
        jnp.max(jnp.where(valid, x, -jnp.inf), axis=-1).astype(jnp.float32))

    @pl.when(j == pl.num_programs(1) - 1)
    def _():
        w1 = w1_ref[...].astype(jnp.float32)
        w2 = w2_ref[...].astype(jnp.float32)
        avg = sum_sc[...] * (1.0 / hw_true)                    # (1, C)
        mx = max_sc[...]
        dn = (((1,), (1,)), ((), ()))
        h = (jnp.maximum(lax.dot_general(avg, w1, dn,
                                         preferred_element_type=jnp.float32), 0.0)
             + jnp.maximum(lax.dot_general(mx, w1, dn,
                                           preferred_element_type=jnp.float32), 0.0))
        logits = lax.dot_general(h, w2, dn,
                                 preferred_element_type=jnp.float32)
        attn_ref[...] = jax.nn.sigmoid(logits)[:, :, None]     # (1, C, 1)


def _cbam_gate_kernel(x_ref, attn_ref, o_ref):
    # x_ref: (1, C, hw_tile)   attn_ref: (1, C, 1)
    o_ref[...] = x_ref[...] * attn_ref[...].astype(o_ref.dtype)


# ----------------------------------------------------------------------------
# Wrapper / tiling heuristics
# ----------------------------------------------------------------------------
def _vmem_cap_bytes():
    """~75% of per-core VMEM: ~48 MiB on v7x (64 MiB), ~96 MiB on v5e/v6e."""
    try:
        return int(pltpu.get_tpu_info().vmem_capacity_bytes) * 3 // 4
    except Exception:
        return 48 << 20        # conservative (safe on v7x)


def _pick_batch_tile(n, per_batch_needed, per_batch_block, target_bytes,
                     budget_bytes, min_steps):
    """Divisor of n: prefer >= min_steps grid steps, then ~target-sized blocks.

    Returns 0 if even a single batch element exceeds the budget (fallback).
    """
    if budget_bytes < per_batch_needed:
        return 0
    cap = budget_bytes // per_batch_needed
    divisors = [d for d in range(1, n + 1) if n % d == 0 and d <= cap]
    if not divisors:
        return 0
    # keep enough grid steps so prologue/epilogue DMAs stay hidden
    best_steps = max(min(n // d, min_steps) for d in divisors)
    pool = [d for d in divisors if min(n // d, min_steps) == best_steps]
    under = [d for d in pool if d * per_batch_block <= target_bytes]
    return max(under) if under else min(pool)


def _cbam_channel_two_pass(x2, w1, w2, *, hw, budget, cap):
    n, c, _ = x2.shape
    cr = w1.shape[0]
    itemsize = x2.dtype.itemsize

    # lane-aligned HW chunk: ~1-2 MiB, 4 double-buffered copies under budget
    lanes_budget = max(128, (max(budget, 1) // (4 * c * itemsize)) // 128 * 128)
    lanes_target = max(128, ((2 << 20) // (c * itemsize)) // 128 * 128)
    hw_tile = int(min(lanes_budget, lanes_target, pl.cdiv(hw, 128) * 128))
    n_chunks = int(pl.cdiv(hw, hw_tile))

    weight_bytes = int((w1.size + w2.size) * 4)
    vmem_limit = int(min(cap, max(32 << 20,
                                  4 * c * hw_tile * itemsize
                                  + 4 * weight_bytes + (4 << 20))))

    # Pass 1: pooling + shared MLP -> attention (N, C, 1), f32.
    attn = pl.pallas_call(
        functools.partial(_cbam_pool_kernel, hw_true=hw, hw_tile=hw_tile),
        out_shape=jax.ShapeDtypeStruct((n, c, 1), jnp.float32),
        grid_spec=pltpu.PrefetchScalarGridSpec(
            num_scalar_prefetch=0,
            grid=(n, n_chunks),
            in_specs=[
                pl.BlockSpec((1, c, hw_tile), lambda b, j: (b, 0, j)),
                pl.BlockSpec((cr, c), lambda b, j: (0, 0)),
                pl.BlockSpec((c, cr), lambda b, j: (0, 0)),
            ],
            out_specs=pl.BlockSpec((1, c, 1), lambda b, j: (b, 0, 0)),
            scratch_shapes=[pltpu.VMEM((1, c), jnp.float32),
                            pltpu.VMEM((1, c), jnp.float32)],
        ),
        compiler_params=pltpu.CompilerParams(
            dimension_semantics=("parallel", "arbitrary"),
            vmem_limit_bytes=vmem_limit),
    )(x2, w1, w2)

    # Pass 2: stream the gate x * attn with HW-chunk tiles.
    out = pl.pallas_call(
        _cbam_gate_kernel,
        out_shape=jax.ShapeDtypeStruct((n, c, hw), x2.dtype),
        grid_spec=pltpu.PrefetchScalarGridSpec(
            num_scalar_prefetch=0,
            grid=(n, n_chunks),
            in_specs=[
                pl.BlockSpec((1, c, hw_tile), lambda b, j: (b, 0, j)),
                pl.BlockSpec((1, c, 1), lambda b, j: (b, 0, 0)),
            ],
            out_specs=pl.BlockSpec((1, c, hw_tile), lambda b, j: (b, 0, j)),
        ),
        compiler_params=pltpu.CompilerParams(
            dimension_semantics=("parallel", "parallel"),
            vmem_limit_bytes=vmem_limit),
    )(x2, attn)
    return out


def cbam_channel(x, w1, w2, *, target_block_bytes=2 << 20,
                 vmem_block_budget=None, min_grid_steps=4):
    """x: (N, C, H, W); w1: (C//r, C); w2: (C, C//r).  Returns x * attn."""
    n, c, h, w = x.shape
    hw = h * w
    cr = w1.shape[0]
    assert w1.shape == (cr, c) and w2.shape == (c, cr)

    x2 = x.reshape(n, c, hw)                       # no pad, no post-slice

    cap = _vmem_cap_bytes()
    budget = cap if vmem_block_budget is None else min(int(vmem_block_budget), cap)

    itemsize = x2.dtype.itemsize
    per_batch_block = c * hw * itemsize
    # 2x double-buffered in + 2x out + ~1 block of f32 reduce temporaries
    per_batch_needed = 4 * per_batch_block + c * hw * 4
    weight_bytes = int((w1.size + w2.size) * 4)
    headroom = 2 << 20

    # TODO(synk): min_grid_steps could be bumped to 8 when 2 TensorCores/chip
    # (v7x) are detected so each core still gets >=4 pipelined steps.
    b_tile = _pick_batch_tile(n, per_batch_needed, per_batch_block,
                              target_block_bytes,
                              budget - weight_bytes - headroom,
                              min_grid_steps)

    if b_tile == 0:
        # Single batch element does not fit the VMEM budget: HW-tiled two-pass.
        out = _cbam_channel_two_pass(x2, w1, w2, hw=hw, budget=budget, cap=cap)
        return out.reshape(n, c, h, w)

    vmem_limit = int(min(cap, max(32 << 20,
                                  b_tile * per_batch_needed
                                  + 4 * weight_bytes + headroom)))

    kernel = functools.partial(_cbam_channel_kernel, hw=hw)
    out = pl.pallas_call(
        kernel,
        out_shape=jax.ShapeDtypeStruct((n, c, hw), x.dtype),
        grid_spec=pltpu.PrefetchScalarGridSpec(
            num_scalar_prefetch=0,
            grid=(n // b_tile,),
            in_specs=[
                pl.BlockSpec((b_tile, c, hw), lambda i: (i, 0, 0)),
                pl.BlockSpec((cr, c), lambda i: (0, 0)),
                pl.BlockSpec((c, cr), lambda i: (0, 0)),
            ],
            out_specs=pl.BlockSpec((b_tile, c, hw), lambda i: (i, 0, 0)),
        ),
        compiler_params=pltpu.CompilerParams(
            dimension_semantics=("parallel",),
            vmem_limit_bytes=vmem_limit,
        ),
    )(x2, w1, w2)

    return out.reshape(n, c, h, w)


def cbam_channel_ref(x, w1, w2):
    """Pure-JAX reference of the PyTorch CBAMChannel forward."""
    xf = x.astype(jnp.float32)
    w1f = w1.astype(jnp.float32)
    w2f = w2.astype(jnp.float32)
    avg = jnp.mean(xf, axis=(2, 3))           # (N, C)
    mx = jnp.max(xf, axis=(2, 3))             # (N, C)

    def fc(v):
        return jnp.maximum(v @ w1f.T, 0.0) @ w2f.T

    attn = jax.nn.sigmoid(fc(avg) + fc(mx))   # (N, C)
    return (xf * attn[:, :, None, None]).astype(x.dtype)


if __name__ == "__main__":
    key = jax.random.PRNGKey(0)

    # --- case 1: 16x16 spatial (HW=256), reduction=16 ------------------------
    n, c, h, w = 2, 32, 16, 16
    cr = c // 16
    k1, k2, k3, key = jax.random.split(key, 4)
    x = jax.random.normal(k1, (n, c, h, w), dtype=jnp.float32)
    w1 = jax.random.normal(k2, (cr, c), dtype=jnp.float32) * 0.1
    w2 = jax.random.normal(k3, (c, cr), dtype=jnp.float32) * 0.1
    out = jax.block_until_ready(cbam_channel(x, w1, w2))
    ref = cbam_channel_ref(x, w1, w2)
    assert out.shape == x.shape
    assert jnp.allclose(out, ref, atol=1e-5, rtol=1e-5)

    # --- case 2: odd spatial (7x7 -> HW=49, non-128-multiple), reduction=4 ---
    n, c, h, w = 2, 16, 7, 7
    cr = c // 4
    k1, k2, k3, key = jax.random.split(key, 4)
    x = jax.random.normal(k1, (n, c, h, w), dtype=jnp.float32)
    w1 = jax.random.normal(k2, (cr, c), dtype=jnp.float32) * 0.1
    w2 = jax.random.normal(k3, (c, cr), dtype=jnp.float32) * 0.1
    out = jax.block_until_ready(cbam_channel(x, w1, w2))
    ref = cbam_channel_ref(x, w1, w2)
    assert jnp.allclose(out, ref, atol=1e-5, rtol=1e-5)

    # --- case 3: bf16 data path, batch tiling ---------------------------------
    n, c, h, w = 4, 32, 16, 16
    cr = c // 16
    k1, k2, k3, key = jax.random.split(key, 4)
    x = jax.random.normal(k1, (n, c, h, w), dtype=jnp.float32).astype(jnp.bfloat16)
    w1 = jax.random.normal(k2, (cr, c), dtype=jnp.float32) * 0.1
    w2 = jax.random.normal(k3, (c, cr), dtype=jnp.float32) * 0.1
    out = jax.block_until_ready(cbam_channel(x, w1, w2))
    ref = cbam_channel_ref(x, w1, w2)
    assert out.dtype == jnp.bfloat16
    assert jnp.allclose(out.astype(jnp.float32), ref.astype(jnp.float32),
                        atol=5e-2, rtol=5e-2)

    # --- case 4: force the two-pass (HW-tiled) fallback via a tiny budget -----
    n, c, h, w = 2, 32, 20, 20            # HW=400 -> 4 chunks of 128 (last partial)
    cr = c // 4
    k1, k2, k3, key = jax.random.split(key, 4)
    x = jax.random.normal(k1, (n, c, h, w), dtype=jnp.float32)
    w1 = jax.random.normal(k2, (cr, c), dtype=jnp.float32) * 0.1
    w2 = jax.random.normal(k3, (c, cr), dtype=jnp.float32) * 0.1
    out = jax.block_until_ready(
        cbam_channel(x, w1, w2, vmem_block_budget=64 << 10))
    ref = cbam_channel_ref(x, w1, w2)
    assert jnp.allclose(out, ref, atol=1e-5, rtol=1e-5)

    print("KERNEL_OK")
</pallas_src>

<mosaic_0001>
module attributes {stable_mosaic.version = 11 : i64} {
  func.func @_cbam_channel_kernel(%arg0: i32, %arg1: memref<1x32x256xf32, #tpu.memory_space<vmem>>, %arg2: memref<2x32xf32, #tpu.memory_space<vmem>>, %arg3: memref<32x2xf32, #tpu.memory_space<vmem>>, %arg4: memref<1x32x256xf32, #tpu.memory_space<vmem>>) attributes {dimension_semantics = [#tpu.dimension_semantics<parallel>], iteration_bounds = array<i64: 2>, scalar_prefetch = 0 : i64, scratch_operands = 0 : i64, tpu.core_type = #tpu.core_type<tc>, window_params = [{transform_indices = @transform_0, window_bounds = array<i64: 1, 32, 256>}, {pipeline_mode = #tpu.pipeline_mode<synchronous>, transform_indices = @transform_1, window_bounds = array<i64: 2, 32>}, {pipeline_mode = #tpu.pipeline_mode<synchronous>, transform_indices = @transform_2, window_bounds = array<i64: 32, 2>}, {transform_indices = @transform_3, window_bounds = array<i64: 1, 32, 256>}]} {
    %c0 = arith.constant 0 : index
    %c0_0 = arith.constant 0 : index
    %c0_1 = arith.constant 0 : index
    %0 = vector.load %arg1[%c0, %c0_0, %c0_1] : memref<1x32x256xf32, #tpu.memory_space<vmem>>, vector<1x32x256xf32>
    %cst = arith.constant dense<0.000000e+00> : vector<1x32xf32>
    %1 = vector.multi_reduction <add>, %0, %cst [2] : vector<1x32x256xf32> to vector<1x32xf32>
    %cst_2 = arith.constant 3.906250e-03 : f32
    %2 = vector.broadcast %cst_2 : f32 to vector<1x32xf32>
    %3 = arith.mulf %1, %2 : vector<1x32xf32>
    %cst_3 = arith.constant dense<0xFF800000> : vector<1x32xf32>
    %4 = vector.multi_reduction <maximumf>, %0, %cst_3 [2] : vector<1x32x256xf32> to vector<1x32xf32>
    %c0_4 = arith.constant 0 : index
    %c0_5 = arith.constant 0 : index
    %5 = vector.load %arg2[%c0_4, %c0_5] : memref<2x32xf32, #tpu.memory_space<vmem>>, vector<2x32xf32>
    %c0_6 = arith.constant 0 : index
    %c0_7 = arith.constant 0 : index
    %6 = vector.load %arg3[%c0_6, %c0_7] : memref<32x2xf32, #tpu.memory_space<vmem>>, vector<32x2xf32>
    %cst_8 = arith.constant dense<0.000000e+00> : vector<1x2xf32>
    %7 = tpu.matmul %3, %5, %cst_8 {dimension_numbers = #tpu.dot_dimension_numbers<[1], [1], [0], [0], [0, 0, 1, 0], [], []>} : vector<1x32xf32>, vector<2x32xf32>, vector<1x2xf32> -> vector<1x2xf32>
    %cst_9 = arith.constant 0.000000e+00 : f32
    %8 = vector.broadcast %cst_9 : f32 to vector<1x2xf32>
    %9 = arith.maximumf %7, %8 : vector<1x2xf32>
    %cst_10 = arith.constant dense<0.000000e+00> : vector<1x2xf32>
    %10 = tpu.matmul %4, %5, %cst_10 {dimension_numbers = #tpu.dot_dimension_numbers<[1], [1], [0], [0], [0, 0, 1, 0], [], []>} : vector<1x32xf32>, vector<2x32xf32>, vector<1x2xf32> -> vector<1x2xf32>
    %cst_11 = arith.constant 0.000000e+00 : f32
    %11 = vector.broadcast %cst_11 : f32 to vector<1x2xf32>
    %12 = arith.maximumf %10, %11 : vector<1x2xf32>
    %13 = arith.addf %9, %12 : vector<1x2xf32>
    %cst_12 = arith.constant dense<0.000000e+00> : vector<1x32xf32>
    %14 = tpu.matmul %13, %6, %cst_12 {dimension_numbers = #tpu.dot_dimension_numbers<[1], [1], [0], [0], [0, 0, 1, 0], [], []>} : vector<1x2xf32>, vector<32x2xf32>, vector<1x32xf32> -> vector<1x32xf32>
    %15 = arith.negf %14 : vector<1x32xf32>
    %16 = math.exp %15 : vector<1x32xf32>
    %cst_13 = arith.constant 1.000000e+00 : f32
    %17 = vector.broadcast %cst_13 : f32 to vector<1x32xf32>
    %18 = arith.addf %17, %16 : vector<1x32xf32>
    %19 = arith.divf %17, %18 : vector<1x32xf32>
    %20 = vector.shape_cast %19 : vector<1x32xf32> to vector<1x32x1xf32>
    %21 = vector.broadcast %20 : vector<1x32x1xf32> to vector<1x32x256xf32>
    %22 = arith.mulf %0, %21 : vector<1x32x256xf32>
    %c0_14 = arith.constant 0 : index
    %c0_15 = arith.constant 0 : index
    %c0_16 = arith.constant 0 : index
    %23 = vector.load %arg4[%c0_14, %c0_15, %c0_16] : memref<1x32x256xf32, #tpu.memory_space<vmem>>, vector<1x32x256xf32>
    tpu.vector_store %arg4[%c0_14, %c0_15, %c0_16], %22 {strides = array<i32>} : memref<1x32x256xf32, #tpu.memory_space<vmem>>, vector<1x32x256xf32>,
    return
  }
  func.func @transform_0(%arg0: i32) -> (i32, i32, i32) {
    %c0_i32 = arith.constant 0 : i32
    %c0_i32_0 = arith.constant 0 : i32
    %c0_i32_1 = arith.constant 0 : i32
    return %arg0, %c0_i32, %c0_i32_0 : i32, i32, i32
  }
  func.func @transform_1(%arg0: i32) -> (i32, i32) {
    %c0_i32 = arith.constant 0 : i32
    %c0_i32_0 = arith.constant 0 : i32
    %c0_i32_1 = arith.constant 0 : i32
    return %c0_i32, %c0_i32_0 : i32, i32
  }
  func.func @transform_2(%arg0: i32) -> (i32, i32) {
    %c0_i32 = arith.constant 0 : i32
    %c0_i32_0 = arith.constant 0 : i32
    %c0_i32_1 = arith.constant 0 : i32
    return %c0_i32, %c0_i32_0 : i32, i32
  }
  func.func @transform_3(%arg0: i32) -> (i32, i32, i32) {
    %c0_i32 = arith.constant 0 : i32
    %c0_i32_0 = arith.constant 0 : i32
    %c0_i32_1 = arith.constant 0 : i32
    return %arg0, %c0_i32, %c0_i32_0 : i32, i32, i32
  }
}

</mosaic_0001>

<llo_original>
// kernel: tpu_custom_call.1
$region0: #{tpu_custom_call.1}
  #allocation0 [shape = 'u32[]', space=smem, size = 0x4, offset = 0x4, fixed_abs, tag = 'smem constant byte address 0x4 - core index']
  #allocation1 [shape = 'u32[144,128]{1,0:T(1,128)}', space=vmem, size = 0x12000, scoped, tag = 'internal scratch']
  %s0 = inlined_call_operand.hbm [shape: f32[2,32,256], index: 0, kind: input, shape index: {}]
  %s1 = inlined_call_operand.vmem [shape: f32[2,32], index: 1, kind: input, shape index: {}]
  %s2 = inlined_call_operand.vmem [shape: f32[32,2], index: 2, kind: input, shape index: {}]
  %s3 = inlined_call_operand.hbm [shape: f32[2,32,256], index: 3, kind: output, shape index: {}]
  %s4 = sld [smem:[#allocation0]]
  $region49: #{tpu_custom_call.1} parent=0
    _
  %s6 = ssub.s32 1, %s4
  %s7 = scalar_select 0, %s6, %s4
  $region1: #{tpu_custom_call.1} parent=0
    #allocation2 [shape = 'u8[65536]{0}', space=vmem, size = 0x10000, scoped, tag = 'input window, operand 0']
    #allocation3 [shape = 's32[2]{0}', space=sflag, size = 0x8, scoped, tag = 'scoped memory for tpu_custom_call.1']
    #allocation4 [shape = 's32[2]{0}', space=sflag, size = 0x8, scoped, tag = 'scoped memory for tpu_custom_call.1']
    #allocation5 [shape = 'u8[65536]{0}', space=vmem, size = 0x10000, scoped, tag = 'output window, operand 0']
    %8 = vsyncpa [#allocation3], 0
    %s9 = scalar_lea.sflag [#allocation3], 1
    %10 = vsyncpa %s9, 0
    %11 = vsyncpa [#allocation4], 0
    %s12 = scalar_lea.sflag [#allocation4], 1
    %13 = vsyncpa %s12, 0
    loop: start=0, step=1, limit=4
    $region2: #{tpu_custom_call.1} parent=1 // loop_pre_header
      _
    $region3: #{tpu_custom_call.1} parent=1 // loop_header
      %s15 = sphi 0, %s19
      %p16 = scmp.ge.s32.totalorder %s15, 4
      %s25 = sphi 0, %s27
      %s28 = sphi 0, %s25
      %s29 = sphi 0, %s28
      %s45 = sphi 0, %s29
      %s49 = sphi 0, %s49
      %s51 = sphi 0, %s49
      %s52 = sphi 0, %s51
      %s66 = sphi 0, %s52
      %s70 = sphi 0, %s70
      %s72 = sphi 0, %s70
      %s73 = sphi 0, %s72
      %s87 = sphi 0, %s73
      %s93 = sphi 0, %s95
      %s96 = sphi 0, %s93
      %s97 = sphi 0, %s96
      %s113 = sphi 0, %s97
    $region4: #{tpu_custom_call.1} parent=1 // loop_header_branch
      %18 = sbr.rel (%p16) target = $region8
    $region5: #{tpu_custom_call.1} parent=1 // loop_body
      %s20 = ssub.s32 %s15, 1
      %s21 = ssub.s32 %s15, 2
      %s22 = sadd.s32 %s15, 1
      %s23 = ssub.s32 %s15, %s22
      %p24 = scmp.eq.s32.totalorder %s23, 0
      %s26 = sadd.s32 %s25, 1
      %s27 = scalar_select %p24, %s25, %s26
      %p30 = pneg %p24
      %p31 = scmp.eq.s32.totalorder %s15, 1
      %p32 = por %p30, %p31
      %p33 = scmp.ne.s32.totalorder %s25, %s28
      %p34 = scmp.eq.s32.totalorder %s15, 0
      %p35 = por %p33, %p34
      %p36 = scmp.ne.s32.totalorder %s25, %s28
      %p37 = scmp.eq.s32.totalorder %s20, 1
      %p38 = por %p36, %p37
      %p39 = scmp.ne.s32.totalorder %s28, %s29
      %p40 = scmp.eq.s32.totalorder %s20, 0
      %p41 = por %p39, %p40
      %p42 = scmp.ne.s32.totalorder %s28, %s29
      %p43 = scmp.eq.s32.totalorder %s21, 1
      %p44 = por %p42, %p43
      %p46 = scmp.ne.s32.totalorder %s29, %s45
      %p47 = scmp.eq.s32.totalorder %s21, 0
      %p48 = por %p46, %p47
      %s50 = sadd.s32 %s49, 1
      %p53 = scmp.eq.s32.totalorder %s15, 1
      %p54 = scmp.ne.s32.totalorder %s49, %s51
      %p55 = scmp.eq.s32.totalorder %s15, 0
      %p56 = por %p54, %p55
      %p57 = scmp.ne.s32.totalorder %s49, %s51
      %p58 = scmp.eq.s32.totalorder %s20, 1
      %p59 = por %p57, %p58
      %p60 = scmp.ne.s32.totalorder %s51, %s52
      %p61 = scmp.eq.s32.totalorder %s20, 0
      %p62 = por %p60, %p61
      %p63 = scmp.ne.s32.totalorder %s51, %s52
      %p64 = scmp.eq.s32.totalorder %s21, 1
      %p65 = por %p63, %p64
      %p67 = scmp.ne.s32.totalorder %s52, %s66
      %p68 = scmp.eq.s32.totalorder %s21, 0
      %p69 = por %p67, %p68
      %s71 = sadd.s32 %s70, 1
      %p74 = scmp.eq.s32.totalorder %s15, 1
      %p75 = scmp.ne.s32.totalorder %s70, %s72
      %p76 = scmp.eq.s32.totalorder %s15, 0
      %p77 = por %p75, %p76
      %p78 = scmp.ne.s32.totalorder %s70, %s72
      %p79 = scmp.eq.s32.totalorder %s20, 1
      %p80 = por %p78, %p79
      %p81 = scmp.ne.s32.totalorder %s72, %s73
      %p82 = scmp.eq.s32.totalorder %s20, 0
      %p83 = por %p81, %p82
      %p84 = scmp.ne.s32.totalorder %s72, %s73
      %p85 = scmp.eq.s32.totalorder %s21, 1
      %p86 = por %p84, %p85
      %p88 = scmp.ne.s32.totalorder %s73, %s87
      %p89 = scmp.eq.s32.totalorder %s21, 0
      %p90 = por %p88, %p89
      %s91 = ssub.s32 %s15, %s22
      %p92 = scmp.eq.s32.totalorder %s91, 0
      %s94 = sadd.s32 %s93, 1
      %s95 = scalar_select %p92, %s93, %s94
      %p98 = pneg %p92
      %p99 = scmp.eq.s32.totalorder %s15, 1
      %p100 = por %p98, %p99
      %p101 = scmp.ne.s32.totalorder %s93, %s96
      %p102 = scmp.eq.s32.totalorder %s15, 0
      %p103 = por %p101, %p102
      %p104 = scmp.ne.s32.totalorder %s93, %s96
      %p105 = scmp.eq.s32.totalorder %s20, 1
      %p106 = por %p104, %p105
      %p107 = scmp.ne.s32.totalorder %s96, %s97
      %p108 = scmp.eq.s32.totalorder %s20, 0
      %p109 = por %p107, %p108
      %p110 = scmp.ne.s32.totalorder %s96, %s97
      %p111 = scmp.eq.s32.totalorder %s21, 1
      %p112 = por %p110, %p111
      %p114 = scmp.ne.s32.totalorder %s97, %s113
      %p115 = scmp.eq.s32.totalorder %s21, 0
      %p116 = por %p114, %p115
      %p117 = scmp.le.s32.totalorder 1, %s15
      %p118 = scmp.lt.s32.totalorder %s15, 3
      %p119 = pnand %p117, %p118
      %p120 = pneg %p119
      // Predicated region
      $region9: #{tpu_custom_call.1} parent=5 // pred_check
        _
      $region10: #{tpu_custom_call.1} parent=5 // pred_check_branch
        %122 = sbr.rel (%p119) target = $region12
      $region11: #{tpu_custom_call.1} parent=5 // pred_region
        %s123 = ssub.s32 %s15, 1
        // Predicated region
        $region13: #{tpu_custom_call.1} parent=11 // pred_check
          %p124 = pneg %p62
        $region14: #{tpu_custom_call.1} parent=11 // pred_check_branch
          %126 = sbr.rel (%p124) target = $region16
        $region15: #{tpu_custom_call.1} parent=11 // pred_region
          _
        $region16: #{tpu_custom_call.1} parent=11 // pred_fallthru
          _
        // Predicated region
        $region17: #{tpu_custom_call.1} parent=11 // pred_check
          %p127 = pneg %p83
        $region18: #{tpu_custom_call.1} parent=11 // pred_check_branch
          %129 = sbr.rel (%p127) target = $region20
        $region19: #{tpu_custom_call.1} parent=11 // pred_region
          _
        $region20: #{tpu_custom_call.1} parent=11 // pred_fallthru
          _
      $region12: #{tpu_custom_call.1} parent=5 // pred_fallthru
        _
      %p130 = scmp.lt.s32.totalorder %s15, 2
      // Predicated region
      $region21: #{tpu_custom_call.1} parent=5 // pred_check
        %p131 = pneg %p130
      $region22: #{tpu_custom_call.1} parent=5 // pred_check_branch
        %133 = sbr.rel (%p131) target = $region24
      $region23: #{tpu_custom_call.1} parent=5 // pred_region
        // Predicated region
        $region25: #{tpu_custom_call.1} parent=23 // pred_check
          %p134 = pneg %p35
        $region26: #{tpu_custom_call.1} parent=23 // pred_check_branch
          %136 = sbr.rel (%p134) target = $region28
        $region27: #{tpu_custom_call.1} parent=23 // pred_region
          %s137 = sand.u32 %s25, 1
          %s138 = scalar_lea.sflag [#allocation3], %s137
          %s139 = sand.u32 %s25, 1
          %s140 = smul.addr %s139, 64
          %s141 = scalar_lea.vmem [#allocation2], %s140
          %s143 = ssub.s32 1024, 1024
          %144 = vsyncadd %s138, %s143
          %s145 = smul.addr %s15, 8
          %s146 = smul.addr %s145, 128
          %s147 = scalar_lea.hbm %s0, %s146
          %s148 = sshll.u32 %s141, 4
          %s149 = int_to_ptr.vmem [resolvable:$true] %s148
          %154 = dma.hbm_to_vmem [thread:$0]  %s147, 1024, %s149, %s138, 256, 256, 16
        $region28: #{tpu_custom_call.1} parent=23 // pred_fallthru
          _
      $region24: #{tpu_custom_call.1} parent=5 // pred_fallthru
        _
      %p155 = scmp.le.s32.totalorder 1, %s15
      %p156 = scmp.lt.s32.totalorder %s15, 3
      %p157 = pnand %p155, %p156
      %p158 = pneg %p157
      // Predicated region
      $region29: #{tpu_custom_call.1} parent=5 // pred_check
        _
      $region30: #{tpu_custom_call.1} parent=5 // pred_check_branch
        %160 = sbr.rel (%p157) target = $region32
      $region31: #{tpu_custom_call.1} parent=5 // pred_region
        %s161 = ssub.s32 %s15, 1
        %s162 = sand.u32 %s28, 1
        %s163 = scalar_lea.sflag [#allocation3], %s162
        %s164 = sand.u32 %s28, 1
        %s165 = smul.addr %s164, 64
        %s166 = scalar_lea.vmem [#allocation2], %s165
        // Predicated region
        $region33: #{tpu_custom_call.1} parent=31 // pred_check
          %p167 = pneg %p41
        $region34: #{tpu_custom_call.1} parent=31 // pred_check_branch
          %169 = sbr.rel (%p167) target = $region36
        $region35: #{tpu_custom_call.1} parent=31 // pred_region
          %170 = dma.done %s163, 1024
        $region36: #{tpu_custom_call.1} parent=31 // pred_fallthru
          _
        %s171 = sand.u32 %s28, 1
        %s172 = scalar_lea.sflag [#allocation3], %s171
        %s173 = sand.u32 %s28, 1
        %s174 = smul.addr %s173, 64
        %s175 = scalar_lea.vmem [#allocation2], %s174
        %p176 = pneg %p41
        %p177 = pneg %p38
        %p178 = pneg %p62
        %p179 = pneg %p59
        %p180 = pneg %p83
        %p181 = pneg %p80
        %p182 = pneg %p109
        %p183 = pneg %p106
        %s184 = sand.u32 %s96, 1
        %s185 = scalar_lea.sflag [#allocation4], %s184
        %s186 = sand.u32 %s96, 1
        %s187 = smul.addr %s186, 64
        %s188 = scalar_lea.vmem [#allocation5], %s187
        %v189 = vld [vmem:[%s166] sm:$0xff]
        %v190 = vld [vmem:[%s166 + $0x8] sm:$0xff]
        %v191 = vld [vmem:[%s166 + $0x10] sm:$0xff]
        %v192 = vld [vmem:[%s166 + $0x18] sm:$0xff]
        %v193 = vld [vmem:[%s166 + $0x20] sm:$0xff]
        %v194 = vld [vmem:[%s166 + $0x28] sm:$0xff]
        %v195 = vld [vmem:[%s166 + $0x30] sm:$0xff]
        %v196 = vld [vmem:[%s166 + $0x38] sm:$0xff]
        %v197 = vadd.f32 %v189, %v190
        %198 = vadd.xlane.f32.xlu0 %v197
        %v199 = vpop.xlane.xlu0 %198
        %v200 = vadd.f32 %v191, %v192
        %201 = vadd.xlane.f32.xlu0 %v200
        %v202 = vpop.xlane.xlu0 %201
        %v203 = vadd.f32 %v193, %v194
        %204 = vadd.xlane.f32.xlu0 %v203
        %v205 = vpop.xlane.xlu0 %204
        %v206 = vadd.f32 %v195, %v196
        %207 = vadd.xlane.f32.xlu0 %v206
        %v208 = vpop.xlane.xlu0 %207
        %v209 = vmul.f32 %v199, 0.00390625
        %v210 = vmul.f32 %v202, 0.00390625
        %v211 = vmul.f32 %v205, 0.00390625
        %v212 = vmul.f32 %v208, 0.00390625
        %v213 = vmax.f32 %v189, %v190
        %214 = vmax.xlane.f32.xlu0 %v213
        %v215 = vpop.xlane.xlu0 %214
        %v216 = vmax.f32 %v191, %v192
        %217 = vmax.xlane.f32.xlu0 %v216
        %v218 = vpop.xlane.xlu0 %217
        %v219 = vmax.f32 %v193, %v194
        %220 = vmax.xlane.f32.xlu0 %v219
        %v221 = vpop.xlane.xlu0 %220
        %v222 = vmax.f32 %v195, %v196
        %223 = vmax.xlane.f32.xlu0 %v222
        %v224 = vpop.xlane.xlu0 %223
        %v225 = vld [vmem:[%s1] sm:$0x3]
        %v226 = vld [vmem:[%s2] sm:$0xff]
        %v227 = vld [vmem:[%s2 + $0x8] sm:$0xff]
        %v228 = vld [vmem:[%s2 + $0x10] sm:$0xff]
        %v229 = vld [vmem:[%s2 + $0x18] sm:$0xff]
        %v234 = vlaneseq
        %v235 = vand.u32 %v234, 127
        %v236 = vlaneseq
        %v237 = vshrl.u32 %v236, 7
        %v238 = vsub.s32 %v235, %v237
        %v239 = vrot.slane %v209, %v238
        %v240 = vadd.s32 %v235, 4294967288
        %v241 = vlaneseq
        %v242 = vshrl.u32 %v241, 7
        %v243 = vsub.s32 %v240, %v242
        %v244 = vrot.slane %v210, %v243
        %vm245 = vcmask 130112
        %v246 = vsel %vm245, %v244, %v239
        %v247 = vadd.s32 %v235, 4294967280
        %v248 = vlaneseq
        %v249 = vshrl.u32 %v248, 7
        %v250 = vsub.s32 %v247, %v249
        %v251 = vrot.slane %v211, %v250
        %vm252 = vcmask 195712
        %v253 = vsel %vm252, %v251, %v246
        %v254 = vadd.s32 %v235, 4294967272
        %v255 = vlaneseq
        %v256 = vshrl.u32 %v255, 7
        %v257 = vsub.s32 %v254, %v256
        %v258 = vrot.slane %v212, %v257
        %vm259 = vcmask 261312
        %v260 = vsel %vm259, %v258, %v253
        %vm261 = vcmask 261120
        %v262 = vsel %vm261, %v260, 0
        %v265 = vsel %vm261, %v225, 0
        %267 = vmatprep.subr.mxu0 0.0
        %268 = vmatpush1.xpose.msra.mxu0 %v265
        %269 = vmatprep.subr.mxu0 0.0
        %270 = vmatpush1.xpose.msra.mxu0 0.0
        %271 = vmatprep.subr.mxu0 0.0
        %272 = vmatpush1.xpose.msra.mxu0 0.0
        %273 = vmatprep.subr.mxu0 0.0
        %274 = vmatpush1.xpose.msra.mxu0 0.0
        %275 = vmatprep.subr.mxu0 0.0
        %276 = vmatpush1.xpose.msra.mxu0 0.0
        %277 = vmatprep.subr.mxu0 0.0
        %278 = vmatpush1.xpose.msra.mxu0 0.0
        %279 = vmatprep.subr.mxu0 0.0
        %280 = vmatpush1.xpose.msra.mxu0 0.0
        %281 = vmatprep.subr.mxu0 0.0
        %282 = vmatpush1.xpose.msra.mxu0 0.0
        %283 = vmatprep.subr.mxu0 0.0
        %284 = vmatpush1.xpose.msra.mxu0 0.0
        %285 = vmatprep.subr.mxu0 0.0
        %286 = vmatpush1.xpose.msra.mxu0 0.0
        %287 = vmatprep.subr.mxu0 0.0
        %288 = vmatpush1.xpose.msra.mxu0 0.0
        %289 = vmatprep.subr.mxu0 0.0
        %290 = vmatpush1.xpose.msra.mxu0 0.0
        %291 = vmatprep.subr.mxu0 0.0
        %292 = vmatpush1.xpose.msra.mxu0 0.0
        %293 = vmatprep.subr.mxu0 0.0
        %294 = vmatpush1.xpose.msra.mxu0 0.0
        %295 = vmatprep.subr.mxu0 0.0
        %296 = vmatpush1.xpose.msra.mxu0 0.0
        %297 = vmatprep.subr.mxu0 0.0
        %298 = vmatpush1.xpose.msra.mxu0 0.0
        %299 = vmatprep.subr.mxu0 0.0
        %300 = vmatpush1.xpose.msra.mxu0 0.0
        %301 = vmatprep.subr.mxu0 0.0
        %302 = vmatpush1.xpose.msra.mxu0 0.0
        %303 = vmatprep.subr.mxu0 0.0
        %304 = vmatpush1.xpose.msra.mxu0 0.0
        %305 = vmatprep.subr.mxu0 0.0
        %306 = vmatpush1.xpose.msra.mxu0 0.0
        %307 = vmatprep.subr.mxu0 0.0
        %308 = vmatpush1.xpose.msra.mxu0 0.0
        %309 = vmatprep.subr.mxu0 0.0
        %310 = vmatpush1.xpose.msra.mxu0 0.0
        %311 = vmatprep.subr.mxu0 0.0
        %312 = vmatpush1.xpose.msra.mxu0 0.0
        %313 = vmatprep.subr.mxu0 0.0
        %314 = vmatpush1.xpose.msra.mxu0 0.0
        %315 = vmatprep.subr.mxu0 0.0
        %316 = vmatpush1.xpose.msra.mxu0 0.0
        %317 = vmatprep.subr.mxu0 0.0
        %318 = vmatpush1.xpose.msra.mxu0 0.0
        %319 = vmatprep.subr.mxu0 0.0
        %320 = vmatpush1.xpose.msra.mxu0 0.0
        %321 = vmatprep.subr.mxu0 0.0
        %322 = vmatpush1.xpose.msra.mxu0 0.0
        %323 = vmatprep.subr.mxu0 0.0
        %324 = vmatpush1.xpose.msra.mxu0 0.0
        %325 = vmatprep.subr.mxu0 0.0
        %326 = vmatpush1.xpose.msra.mxu0 0.0
        %327 = vmatprep.subr.mxu0 0.0
        %328 = vmatpush1.xpose.msra.mxu0 0.0
        %329 = vmatprep.subr.mxu0 0.0
        %330 = vmatpush1.xpose.msra.mxu0 0.0
        %331 = vmatprep.mubr.f32.mxu0 0.0
        %332 = vmatmul.mubr.f32.gmra.mrb[0].mxu0 %v262
        %v333 = vpop.f32.mrb[0].mxu0
        %v334 = vadd.f32 0.0, %v333
        %v335 = vpop.f32.mrb[0].mxu0
        %336 = vdwg.mxu0
        %v337 = vmax.f32 %v334, 0.0
        %v342 = vlaneseq
        %v343 = vshrl.u32 %v342, 7
        %v344 = vsub.s32 %v235, %v343
        %v345 = vrot.slane %v215, %v344
        %v346 = vlaneseq
        %v347 = vshrl.u32 %v346, 7
        %v348 = vsub.s32 %v240, %v347
        %v349 = vrot.slane %v218, %v348
        %v350 = vsel %vm245, %v349, %v345
        %v351 = vlaneseq
        %v352 = vshrl.u32 %v351, 7
        %v353 = vsub.s32 %v247, %v352
        %v354 = vrot.slane %v221, %v353
        %v355 = vsel %vm252, %v354, %v350
        %v356 = vlaneseq
        %v357 = vshrl.u32 %v356, 7
        %v358 = vsub.s32 %v254, %v357
        %v359 = vrot.slane %v224, %v358
        %v360 = vsel %vm259, %v359, %v355
        %v361 = vsel %vm261, %v360, 0
        %363 = vmatprep.subr.mxu0 0.0
        %364 = vmatpush1.xpose.msra.mxu0 %v265
        %365 = vmatprep.subr.mxu0 0.0
        %366 = vmatpush1.xpose.msra.mxu0 0.0
        %367 = vmatprep.subr.mxu0 0.0
        %368 = vmatpush1.xpose.msra.mxu0 0.0
        %369 = vmatprep.subr.mxu0 0.0
        %370 = vmatpush1.xpose.msra.mxu0 0.0
        %371 = vmatprep.subr.mxu0 0.0
        %372 = vmatpush1.xpose.msra.mxu0 0.0
        %373 = vmatprep.subr.mxu0 0.0
        %374 = vmatpush1.xpose.msra.mxu0 0.0
        %375 = vmatprep.subr.mxu0 0.0
        %376 = vmatpush1.xpose.msra.mxu0 0.0
        %377 = vmatprep.subr.mxu0 0.0
        %378 = vmatpush1.xpose.msra.mxu0 0.0
        %379 = vmatprep.subr.mxu0 0.0
        %380 = vmatpush1.xpose.msra.mxu0 0.0
        %381 = vmatprep.subr.mxu0 0.0
        %382 = vmatpush1.xpose.msra.mxu0 0.0
        %383 = vmatprep.subr.mxu0 0.0
        %384 = vmatpush1.xpose.msra.mxu0 0.0
        %385 = vmatprep.subr.mxu0 0.0
        %386 = vmatpush1.xpose.msra.mxu0 0.0
        %387 = vmatprep.subr.mxu0 0.0
        %388 = vmatpush1.xpose.msra.mxu0 0.0
        %389 = vmatprep.subr.mxu0 0.0
        %390 = vmatpush1.xpose.msra.mxu0 0.0
        %391 = vmatprep.subr.mxu0 0.0
        %392 = vmatpush1.xpose.msra.mxu0 0.0
        %393 = vmatprep.subr.mxu0 0.0
        %394 = vmatpush1.xpose.msra.mxu0 0.0
        %395 = vmatprep.subr.mxu0 0.0
        %396 = vmatpush1.xpose.msra.mxu0 0.0
        %397 = vmatprep.subr.mxu0 0.0
        %398 = vmatpush1.xpose.msra.mxu0 0.0
        %399 = vmatprep.subr.mxu0 0.0
        %400 = vmatpush1.xpose.msra.mxu0 0.0
        %401 = vmatprep.subr.mxu0 0.0
        %402 = vmatpush1.xpose.msra.mxu0 0.0
        %403 = vmatprep.subr.mxu0 0.0
        %404 = vmatpush1.xpose.msra.mxu0 0.0
        %405 = vmatprep.subr.mxu0 0.0
        %406 = vmatpush1.xpose.msra.mxu0 0.0
        %407 = vmatprep.subr.mxu0 0.0
        %408 = vmatpush1.xpose.msra.mxu0 0.0
        %409 = vmatprep.subr.mxu0 0.0
        %410 = vmatpush1.xpose.msra.mxu0 0.0
        %411 = vmatprep.subr.mxu0 0.0
        %412 = vmatpush1.xpose.msra.mxu0 0.0
        %413 = vmatprep.subr.mxu0 0.0
        %414 = vmatpush1.xpose.msra.mxu0 0.0
        %415 = vmatprep.subr.mxu0 0.0
        %416 = vmatpush1.xpose.msra.mxu0 0.0
        %417 = vmatprep.subr.mxu0 0.0
        %418 = vmatpush1.xpose.msra.mxu0 0.0
        %419 = vmatprep.subr.mxu0 0.0
        %420 = vmatpush1.xpose.msra.mxu0 0.0
        %421 = vmatprep.subr.mxu0 0.0
        %422 = vmatpush1.xpose.msra.mxu0 0.0
        %423 = vmatprep.subr.mxu0 0.0
        %424 = vmatpush1.xpose.msra.mxu0 0.0
        %425 = vmatprep.subr.mxu0 0.0
        %426 = vmatpush1.xpose.msra.mxu0 0.0
        %427 = vmatprep.mubr.f32.mxu0 0.0
        %428 = vmatmul.mubr.f32.gmra.mrb[0].mxu0 %v361
        %v429 = vpop.f32.mrb[0].mxu0
        %v430 = vadd.f32 0.0, %v429
        %v431 = vpop.f32.mrb[0].mxu0
        %432 = vdwg.mxu0
        %v433 = vmax.f32 %v430, 0.0
        %v434 = vadd.f32 %v337, %v433
        %vm435 = vcmask 15360
        %v437 = vsel %vm435, %v434, 0
        %v440 = vsel %vm435, %v226, 0
        %v443 = vsel %vm435, %v227, 0
        %v446 = vsel %vm435, %v228, 0
        %v449 = vsel %vm435, %v229, 0
        %451 = vmatprep.subr.mxu0 0.0
        %452 = vmatpush1.xpose.msra.mxu0 %v440
        %453 = vmatprep.subr.mxu0 0.0
        %454 = vmatpush1.xpose.msra.mxu0 %v443
        %455 = vmatprep.subr.mxu0 0.0
        %456 = vmatpush1.xpose.msra.mxu0 %v446
        %457 = vmatprep.subr.mxu0 0.0
        %458 = vmatpush1.xpose.msra.mxu0 %v449
        %459 = vmatprep.subr.mxu0 0.0
        %460 = vmatpush1.xpose.msra.mxu0 0.0
        %461 = vmatprep.subr.mxu0 0.0
        %462 = vmatpush1.xpose.msra.mxu0 0.0
        %463 = vmatprep.subr.mxu0 0.0
        %464 = vmatpush1.xpose.msra.mxu0 0.0
        %465 = vmatprep.subr.mxu0 0.0
        %466 = vmatpush1.xpose.msra.mxu0 0.0
        %467 = vmatprep.subr.mxu0 0.0
        %468 = vmatpush1.xpose.msra.mxu0 0.0
        %469 = vmatprep.subr.mxu0 0.0
        %470 = vmatpush1.xpose.msra.mxu0 0.0
        %471 = vmatprep.subr.mxu0 0.0
        %472 = vmatpush1.xpose.msra.mxu0 0.0
        %473 = vmatprep.subr.mxu0 0.0
        %474 = vmatpush1.xpose.msra.mxu0 0.0
        %475 = vmatprep.subr.mxu0 0.0
        %476 = vmatpush1.xpose.msra.mxu0 0.0
        %477 = vmatprep.subr.mxu0 0.0
        %478 = vmatpush1.xpose.msra.mxu0 0.0
        %479 = vmatprep.subr.mxu0 0.0
        %480 = vmatpush1.xpose.msra.mxu0 0.0
        %481 = vmatprep.subr.mxu0 0.0
        %482 = vmatpush1.xpose.msra.mxu0 0.0
        %483 = vmatprep.subr.mxu0 0.0
        %484 = vmatpush1.xpose.msra.mxu0 0.0
        %485 = vmatprep.subr.mxu0 0.0
        %486 = vmatpush1.xpose.msra.mxu0 0.0
        %487 = vmatprep.subr.mxu0 0.0
        %488 = vmatpush1.xpose.msra.mxu0 0.0
        %489 = vmatprep.subr.mxu0 0.0
        %490 = vmatpush1.xpose.msra.mxu0 0.0
        %491 = vmatprep.subr.mxu0 0.0
        %492 = vmatpush1.xpose.msra.mxu0 0.0
        %493 = vmatprep.subr.mxu0 0.0
        %494 = vmatpush1.xpose.msra.mxu0 0.0
        %495 = vmatprep.subr.mxu0 0.0
        %496 = vmatpush1.xpose.msra.mxu0 0.0
        %497 = vmatprep.subr.mxu0 0.0
        %498 = vmatpush1.xpose.msra.mxu0 0.0
        %499 = vmatprep.subr.mxu0 0.0
        %500 = vmatpush1.xpose.msra.mxu0 0.0
        %501 = vmatprep.subr.mxu0 0.0
        %502 = vmatpush1.xpose.msra.mxu0 0.0
        %503 = vmatprep.subr.mxu0 0.0
        %504 = vmatpush1.xpose.msra.mxu0 0.0
        %505 = vmatprep.subr.mxu0 0.0
        %506 = vmatpush1.xpose.msra.mxu0 0.0
        %507 = vmatprep.subr.mxu0 0.0
        %508 = vmatpush1.xpose.msra.mxu0 0.0
        %509 = vmatprep.subr.mxu0 0.0
        %510 = vmatpush1.xpose.msra.mxu0 0.0
        %511 = vmatprep.subr.mxu0 0.0
        %512 = vmatpush1.xpose.msra.mxu0 0.0
        %513 = vmatprep.subr.mxu0 0.0
        %514 = vmatpush1.xpose.msra.mxu0 0.0
        %515 = vmatprep.mubr.f32.mxu0 0.0
        %516 = vmatmul.mubr.f32.gmra.mrb[0].mxu0 %v437
        %v517 = vpop.f32.mrb[0].mxu0
        %v518 = vadd.f32 0.0, %v517
        %v519 = vpop.f32.mrb[0].mxu0
        %520 = vdwg.mxu0
        %v521 = vxor.u32 %v518, 2147483648
        %v522 = vmul.f32 %v521, 1.442695
        %v523 = vpow.pop %v522
        %v524 = vadd.f32 %v523, 1.0
        %v525 = vrcp.pop %v524
        %v526 = vmul.f32 1.0, %v525
        %v527 = vlaneseq
        %v528 = vshrl.u32 %v527, 7
        %v529 = vsub.s32 0, %v528
        %v530 = vrot.slane %v526, %v529
        %532 = vbcast.lane.b32.xlu0 %v530, 256
        %v533 = vpop.permute.xlu0 %532
        %s535 = sor.u32 256, 8
        %536 = vbcast.lane.b32.xlu0 %v530, %s535
        %v537 = vpop.permute.xlu0 %536
        %s539 = sor.u32 256, 16
        %540 = vbcast.lane.b32.xlu0 %v530, %s539
        %v541 = vpop.permute.xlu0 %540
        %s543 = sor.u32 256, 24
        %544 = vbcast.lane.b32.xlu0 %v530, %s543
        %v545 = vpop.permute.xlu0 %544
        %v546 = vmul.f32 %v189, %v533
        %v547 = vmul.f32 %v190, %v533
        %v548 = vmul.f32 %v191, %v537
        %v549 = vmul.f32 %v192, %v537
        %v550 = vmul.f32 %v193, %v541
        %v551 = vmul.f32 %v194, %v541
        %v552 = vmul.f32 %v195, %v545
        %v553 = vmul.f32 %v196, %v545
        %554 = vst [vmem:[%s188] sm:$0xff] %v546
        %555 = vst [vmem:[%s188 + $0x8] sm:$0xff] %v547
        %556 = vst [vmem:[%s188 + $0x10] sm:$0xff] %v548
        %557 = vst [vmem:[%s188 + $0x18] sm:$0xff] %v549
        %558 = vst [vmem:[%s188 + $0x20] sm:$0xff] %v550
        %559 = vst [vmem:[%s188 + $0x28] sm:$0xff] %v551
        %560 = vst [vmem:[%s188 + $0x30] sm:$0xff] %v552
        %561 = vst [vmem:[%s188 + $0x38] sm:$0xff] %v553
        %s562 = sand.u32 %s96, 1
        %s563 = scalar_lea.sflag [#allocation4], %s562
        %s564 = sand.u32 %s96, 1
        %s565 = smul.addr %s564, 64
        %s566 = scalar_lea.vmem [#allocation5], %s565
        // Predicated region
        $region37: #{tpu_custom_call.1} parent=31 // pred_check
          %p567 = pneg %p106
        $region38: #{tpu_custom_call.1} parent=31 // pred_check_branch
          %569 = sbr.rel (%p567) target = $region40
        $region39: #{tpu_custom_call.1} parent=31 // pred_region
          %s571 = ssub.s32 1024, 1024
          %572 = vsyncadd %s563, %s571
          %s573 = smul.addr %s20, 8
          %s574 = smul.addr %s573, 128
          %s575 = scalar_lea.hbm %s3, %s574
          %s576 = sshll.u32 %s566, 4
          %s577 = int_to_ptr.vmem [resolvable:$true] %s576
          %582 = dma.vmem_to_hbm [thread:$0]  %s577, 1024, %s575, %s563, 256, 256, 16
        $region40: #{tpu_custom_call.1} parent=31 // pred_fallthru
          _
      $region32: #{tpu_custom_call.1} parent=5 // pred_fallthru
        _
      %p583 = scmp.le.s32.totalorder 2, %s15
      // Predicated region
      $region41: #{tpu_custom_call.1} parent=5 // pred_check
        %p584 = pneg %p583
      $region42: #{tpu_custom_call.1} parent=5 // pred_check_branch
        %586 = sbr.rel (%p584) target = $region44
      $region43: #{tpu_custom_call.1} parent=5 // pred_region
        %s587 = ssub.s32 %s15, 2
        // Predicated region
        $region45: #{tpu_custom_call.1} parent=43 // pred_check
          %p588 = pneg %p112
        $region46: #{tpu_custom_call.1} parent=43 // pred_check_branch
          %590 = sbr.rel (%p588) target = $region48
        $region47: #{tpu_custom_call.1} parent=43 // pred_region
          %s591 = sand.u32 %s97, 1
          %s592 = scalar_lea.sflag [#allocation4], %s591
          %s593 = sand.u32 %s97, 1
          %s594 = smul.addr %s593, 64
          %s595 = scalar_lea.vmem [#allocation5], %s594
          %596 = dma.done %s592, 1024
        $region48: #{tpu_custom_call.1} parent=43 // pred_fallthru
          _
      $region44: #{tpu_custom_call.1} parent=5 // pred_fallthru
        _
    $region6: #{tpu_custom_call.1} parent=1 // loop_footer
      %s19 = sadd.s32 1, %s15
    $region7: #{tpu_custom_call.1} parent=1 // loop_footer_branch
      %14 = sbr.rel target = $region3
    $region8: #{tpu_custom_call.1} parent=1 // loop_exit
      _
    %597 = vsyncpa [#allocation3], 1
    %s598 = scalar_lea.sflag [#allocation3], 1
    %599 = vsyncpa %s598, 1
    %600 = vsyncpa [#allocation4], 1
    %s601 = scalar_lea.sflag [#allocation4], 1
    %602 = vsyncpa %s601, 1

</llo_original>
